<compile_context>
chip_gen: v7x
topology: tpu7x:2x2x1
jax: 0.10.0
libtpu: 0.0.40
codegen_flags: <defaults>
</compile_context>

<pallas_src>
import jax
import jax.numpy as jnp
from jax import lax
from jax.experimental import pallas as pl
from jax.experimental.pallas import tpu as pltpu


_LANES = 128
_ROW_CHUNK = 16                        # rows folded per inner-loop step
_TARGET_BLOCK_BYTES = 4 * 1024 * 1024  # per-input VMEM tile (double-buffered)
_PALLAS_MIN_ELEMENTS = 64 * 1024       # below this a fused XLA expression wins
_MIN_BCAST_LANES = 64                  # min S for the in-kernel-broadcast layout


def _round_up(x, m):
    return ((x + m - 1) // m) * m


# ----------------------------------------------------------------------------
# Kernel: streaming sum of |p - g| * w over a (R, C) slab.
#   p block: (tr, C);  g/w blocks: (tr, C) (equal-shape) or (tr, 1) (row-
#   broadcast across lanes).  Grid = (2 cores, row-blocks-per-core).
# ----------------------------------------------------------------------------
def _weighted_l1_sum_kernel(p_ref, g_ref, w_ref, out_ref, acc_ref):
    r = pl.program_id(1)

    @pl.when(r == 0)
    def _init():
        acc_ref[...] = jnp.zeros_like(acc_ref)

    n_sub = p_ref.shape[0] // _ROW_CHUNK  # static

    def body(j, acc):
        i0 = pl.multiple_of(j * _ROW_CHUNK, _ROW_CHUNK)
        # Upcast to f32 before the elementwise math (PyTorch-style promotion);
        # live temporaries stay at a few vregs per iteration.
        p = p_ref[pl.ds(i0, _ROW_CHUNK), :].astype(jnp.float32)
        g = g_ref[pl.ds(i0, _ROW_CHUNK), :].astype(jnp.float32)
        w = w_ref[pl.ds(i0, _ROW_CHUNK), :].astype(jnp.float32)
        return acc + jnp.sum(jnp.abs(p - g) * w, axis=0, keepdims=True)

    acc = lax.fori_loop(0, n_sub, body,
                        jnp.zeros(acc_ref.shape, dtype=jnp.float32))
    acc_ref[...] += acc

    @pl.when(r == pl.num_programs(1) - 1)
    def _finalize():
        # Single cross-lane reduce per core; splat into this core's out block.
        total = jnp.sum(acc_ref[...])
        out_ref[...] = jnp.zeros(out_ref.shape, jnp.float32) + total


def _weighted_l1_sum_2d(p2, g2, w2):
    """sum(|p2 - g2| * w2) with g2/w2 of shape (R, C) or (R, 1)."""
    R0, C = p2.shape
    gc = g2.shape[1]
    assert g2.shape == (R0, gc) and w2.shape == (R0, gc)
    assert gc == C or gc == 1

    itemsize = jnp.dtype(p2.dtype).itemsize
    bytes_per_row = _round_up(C, _LANES) * itemsize
    tr_max = max(_ROW_CHUNK,
                 (_TARGET_BLOCK_BYTES // bytes_per_row) // _ROW_CHUNK * _ROW_CHUNK)

    # Even number of row-blocks -> leading "parallel" axis of size 2 can be
    # split across v7x's two TensorCores.  Recompute tr after fixing the block
    # count so padding stays bounded (review: avoid over-padding).
    nblocks = pl.cdiv(R0, tr_max)
    nblocks = max(2, nblocks + (nblocks % 2))
    tr = _round_up(pl.cdiv(R0, nblocks), _ROW_CHUNK)
    R = nblocks * tr
    nb2 = nblocks // 2

    def _pad_rows(x):
        if x.shape[0] != R:
            # Padded rows are all-zero in p, g and w -> contribute 0.
            x = jnp.pad(x, ((0, R - x.shape[0]), (0, 0)))
        return x

    p2, g2, w2 = _pad_rows(p2), _pad_rows(g2), _pad_rows(w2)

    def row_spec(cols):
        return pl.BlockSpec((tr, cols), lambda c, r: (c * nb2 + r, 0))

    out = pl.pallas_call(
        _weighted_l1_sum_kernel,
        out_shape=jax.ShapeDtypeStruct((2, 8, _LANES), jnp.float32),
        grid_spec=pltpu.PrefetchScalarGridSpec(
            num_scalar_prefetch=0,
            grid=(2, nb2),
            in_specs=[row_spec(C), row_spec(gc), row_spec(gc)],
            out_specs=pl.BlockSpec((1, 8, _LANES), lambda c, r: (c, 0, 0)),
            scratch_shapes=[pltpu.VMEM((1, C), jnp.float32)],
        ),
        compiler_params=pltpu.CompilerParams(
            dimension_semantics=("parallel", "arbitrary")),
    )(p2, g2, w2)
    # One tiny partial per core; sum them here.
    return jnp.sum(out[:, 0, 0])


def _weighted_l1_sum_equal(p, g, w):
    """Equal-shape variant: flatten into a lane-dense (R, C) slab."""
    assert p.shape == g.shape == w.shape
    n = int(p.size)
    # Prefer a lane width that divides n so reshape is free (no pad copy).
    C = 8 * _LANES
    for cand in (1024, 512, 256, 128):
        if n % cand == 0:
            C = cand
            break
    R0 = pl.cdiv(n, C)

    def prep(x):
        x = x.reshape(-1)
        if R0 * C != n:
            x = jnp.pad(x, (0, R0 * C - n))   # fused with the reshape by XLA
        return x.reshape(R0, C)

    return _weighted_l1_sum_2d(prep(p), prep(g), prep(w))


def _weighted_l1_sum_xla(p, g, w):
    """Fused-XLA fast path for tiny inputs (g/w broadcast against p)."""
    return jnp.sum(jnp.abs(p.astype(jnp.float32) - g.astype(jnp.float32))
                   * w.astype(jnp.float32))


# ----------------------------------------------------------------------------
# Module forward: faithful port of L1JointRegression.forward.
# ----------------------------------------------------------------------------
def l1_joint_regression(pred_jts, target_uv, target_uv_weight,
                        size_average=True, *, force_pallas=False):
    pred_jts = jnp.asarray(pred_jts)
    target_uv = jnp.asarray(target_uv)
    target_uv_weight = jnp.asarray(target_uv_weight)

    n = int(pred_jts.size)
    use_pallas = force_pallas or n >= _PALLAS_MIN_ELEMENTS
    itemsize = jnp.dtype(pred_jts.dtype).itemsize

    if pred_jts.ndim == 4:
        B, K, S, D = pred_jts.shape
        gt = target_uv.reshape(B, K, D)
        w = target_uv_weight.reshape(B, K, D)
        divisor = jnp.float32(S)                      # "... / shape[2]"
        if not use_pallas:
            loss_sum = _weighted_l1_sum_xla(
                pred_jts, gt[:, :, None, :], w[:, :, None, :])
        elif (S >= _MIN_BCAST_LANES and
              _round_up(S, _LANES) * _ROW_CHUNK * itemsize <= _TARGET_BLOCK_BYTES):
            # In-kernel broadcast of gt/w across the sample axis: pred is
            # presented as (B*K*D, S); gt/w stay at (B*K*D, 1).  No pred-sized
            # broadcast is ever written to HBM.
            p2 = jnp.transpose(pred_jts, (0, 1, 3, 2)).reshape(B * K * D, S)
            g2 = gt.reshape(B * K * D, 1)
            w2 = w.reshape(B * K * D, 1)
            loss_sum = _weighted_l1_sum_2d(p2, g2, w2)
        else:
            # TODO(synk): small-S 4-D inputs still materialize the gt/w
            #             broadcast (lane-dense layout would otherwise be
            #             wasted on a tiny sample axis).
            gt_b = jnp.broadcast_to(gt[:, :, None, :], pred_jts.shape)
            w_b = jnp.broadcast_to(w[:, :, None, :], pred_jts.shape)
            loss_sum = _weighted_l1_sum_equal(pred_jts, gt_b, w_b)
    else:
        gt = target_uv.reshape(pred_jts.shape)
        w = target_uv_weight.reshape(pred_jts.shape)
        divisor = jnp.float32(1.0)
        if not use_pallas:
            loss_sum = _weighted_l1_sum_xla(pred_jts, gt, w)
        else:
            loss_sum = _weighted_l1_sum_equal(pred_jts, gt, w)

    # weights.sum() in the reference is over the (un-broadcast) weight tensor.
    w_sum = jnp.sum(target_uv_weight.astype(jnp.float32))

    if size_average:
        loss = jnp.where(w_sum > 0,
                         loss_sum / jnp.float32(pred_jts.shape[0]),
                         loss_sum)
    else:
        loss = loss_sum
    return loss / divisor


# ----------------------------------------------------------------------------
# Pure-JAX reference for correctness checking.
# ----------------------------------------------------------------------------
def _reference(pred_jts, target_uv, target_uv_weight, size_average=True):
    pred = jnp.asarray(pred_jts, dtype=jnp.float32)
    gt = jnp.asarray(target_uv, dtype=jnp.float32)
    w = jnp.asarray(target_uv_weight, dtype=jnp.float32)
    if pred.ndim == 4:
        B, K, S, D = pred.shape
        gt = gt.reshape(B, K, 1, D)
        w = w.reshape(B, K, 1, D)
        div = S
    else:
        gt = gt.reshape(pred.shape)
        w = w.reshape(pred.shape)
        div = 1
    out = jnp.abs(pred - gt) * w
    total = jnp.sum(out)
    if size_average:
        total = jnp.where(jnp.sum(w) > 0, total / pred.shape[0], total)
    return total / div


if __name__ == "__main__":
    key = jax.random.PRNGKey(0)
    ks = jax.random.split(key, 12)
    tol = dict(rtol=1e-4, atol=1e-4)

    # 1) Pose-sized 4-D input -> tiny-input fast path (no Pallas launch).
    B, K, S, D = 2, 8, 4, 2
    pred = jax.random.normal(ks[0], (B, K, S, D), dtype=jnp.float32)
    uv = jax.random.normal(ks[1], (B, K, D), dtype=jnp.float32)
    uvw = (jax.random.uniform(ks[2], (B, K, D)) > 0.2).astype(jnp.float32)
    out = l1_joint_regression(pred, uv, uvw, True)
    jax.block_until_ready(out)
    assert jnp.allclose(out, _reference(pred, uv, uvw, True), **tol)

    # 2) Same tiny input forced through the Pallas kernel (equal-shape path).
    out = l1_joint_regression(pred, uv, uvw, True, force_pallas=True)
    jax.block_until_ready(out)
    assert jnp.allclose(out, _reference(pred, uv, uvw, True), **tol)

    # 3) Wide sample axis -> in-kernel gt/w broadcast kernel (no HBM broadcast).
    B, K, S, D = 2, 8, 512, 2
    pred = jax.random.normal(ks[3], (B, K, S, D), dtype=jnp.float32)
    uv = jax.random.normal(ks[4], (B, K, D), dtype=jnp.float32)
    uvw = (jax.random.uniform(ks[5], (B, K, D)) > 0.2).astype(jnp.float32)
    out = l1_joint_regression(pred, uv, uvw, True, force_pallas=True)
    jax.block_until_ready(out)
    assert jnp.allclose(out, _reference(pred, uv, uvw, True), **tol)

    # 3b) size_average=False path.
    out_ns = l1_joint_regression(pred, uv, uvw, False, force_pallas=True)
    jax.block_until_ready(out_ns)
    assert jnp.allclose(out_ns, _reference(pred, uv, uvw, False), **tol)

    # 3c) bf16 pred with f32 targets/weights (mixed-dtype operands).
    pred_b = pred.astype(jnp.bfloat16)
    out_b = l1_joint_regression(pred_b, uv, uvw, True, force_pallas=True)
    jax.block_until_ready(out_b)
    ref_b = _reference(pred_b.astype(jnp.float32), uv, uvw, True)
    assert jnp.allclose(out_b, ref_b, rtol=1e-3, atol=1e-3)

    # 4) Ragged shapes: S not a multiple of 128, rows not a multiple of 16.
    B, K, S, D = 2, 17, 100, 2
    pred = jax.random.normal(ks[6], (B, K, S, D), dtype=jnp.float32)
    uv = jax.random.normal(ks[7], (B, K, D), dtype=jnp.float32)
    uvw = (jax.random.uniform(ks[8], (B, K, D)) > 0.2).astype(jnp.float32)
    out = l1_joint_regression(pred, uv, uvw, True, force_pallas=True)
    jax.block_until_ready(out)
    assert jnp.allclose(out, _reference(pred, uv, uvw, True), **tol)

    # 5) Non-4-D branch (pred already (B, K, D)), equal-shape kernel path.
    B, K, D = 4, 16, 2
    pred3 = jax.random.normal(ks[9], (B, K, D), dtype=jnp.float32)
    uv3 = jax.random.normal(ks[10], (B, K, D), dtype=jnp.float32)
    uvw3 = (jax.random.uniform(ks[11], (B, K, D)) > 0.2).astype(jnp.float32)
    out3 = l1_joint_regression(pred3, uv3, uvw3, True, force_pallas=True)
    jax.block_until_ready(out3)
    assert jnp.allclose(out3, _reference(pred3, uv3, uvw3, True), **tol)

    print("KERNEL_OK")
</pallas_src>

<mosaic_0001>
module attributes {stable_mosaic.version = 11 : i64} {
  func.func @_weighted_l1_sum_kernel(%arg0: i32, %arg1: i32, %arg2: memref<16x128xf32, #tpu.memory_space<vmem>>, %arg3: memref<16x128xf32, #tpu.memory_space<vmem>>, %arg4: memref<16x128xf32, #tpu.memory_space<vmem>>, %arg5: memref<1x8x128xf32, #tpu.memory_space<vmem>>, %arg6: memref<1x128xf32, #tpu.memory_space<vmem>>) attributes {dimension_semantics = [#tpu.dimension_semantics<parallel>, #tpu.dimension_semantics<arbitrary>], iteration_bounds = array<i64: 2, 1>, scalar_prefetch = 0 : i64, scratch_operands = 1 : i64, tpu.core_type = #tpu.core_type<tc>, window_params = [{transform_indices = @transform_0, window_bounds = array<i64: 16, 128>}, {transform_indices = @transform_1, window_bounds = array<i64: 16, 128>}, {transform_indices = @transform_2, window_bounds = array<i64: 16, 128>}, {transform_indices = @transform_3, window_bounds = array<i64: 1, 8, 128>}]} {
    %c0_i32 = arith.constant 0 : i32
    %0 = arith.cmpi eq, %arg1, %c0_i32 : i32
    %1 = arith.extui %0 : i1 to i32
    %c0_i32_0 = arith.constant 0 : i32
    %2 = arith.cmpi ne, %1, %c0_i32_0 : i32
    scf.if %2 {
      %cst_11 = arith.constant 0.000000e+00 : f32
      %24 = vector.broadcast %cst_11 : f32 to vector<1x128xf32>
      %c0_12 = arith.constant 0 : index
      %c0_13 = arith.constant 0 : index
      %25 = vector.load %arg6[%c0_12, %c0_13] : memref<1x128xf32, #tpu.memory_space<vmem>>, vector<1x128xf32>
      tpu.vector_store %arg6[%c0_12, %c0_13], %24 {strides = array<i32>} : memref<1x128xf32, #tpu.memory_space<vmem>>, vector<1x128xf32>,
    } else {
    }
    %cst = arith.constant 0.000000e+00 : f32
    %3 = vector.broadcast %cst : f32 to vector<1x128xf32>
    %c0_i32_1 = arith.constant 0 : i32
    %c16_i32 = arith.constant 16 : i32
    %4 = arith.muli %c0_i32_1, %c16_i32 : i32
    %5 = tpu.assume_multiple %4, 16 : i32
    %6 = arith.index_cast %5 : i32 to index
    %c0 = arith.constant 0 : index
    %7 = vector.load %arg2[%6, %c0] : memref<16x128xf32, #tpu.memory_space<vmem>>, vector<16x128xf32>
    %8 = arith.index_cast %5 : i32 to index
    %c0_2 = arith.constant 0 : index
    %9 = vector.load %arg3[%8, %c0_2] : memref<16x128xf32, #tpu.memory_space<vmem>>, vector<16x128xf32>
    %10 = arith.index_cast %5 : i32 to index
    %c0_3 = arith.constant 0 : index
    %11 = vector.load %arg4[%10, %c0_3] : memref<16x128xf32, #tpu.memory_space<vmem>>, vector<16x128xf32>
    %12 = arith.subf %7, %9 : vector<16x128xf32>
    %13 = math.absf %12 : vector<16x128xf32>
    %14 = arith.mulf %13, %11 : vector<16x128xf32>
    %cst_4 = arith.constant dense<0.000000e+00> : vector<128xf32>
    %15 = vector.multi_reduction <add>, %14, %cst_4 [0] : vector<16x128xf32> to vector<128xf32>
    %16 = vector.shape_cast %15 : vector<128xf32> to vector<1x128xf32>
    %17 = arith.addf %3, %16 : vector<1x128xf32>
    %c1_i32 = arith.constant 1 : i32
    %c0_5 = arith.constant 0 : index
    %c0_6 = arith.constant 0 : index
    %18 = vector.load %arg6[%c0_5, %c0_6] : memref<1x128xf32, #tpu.memory_space<vmem>>, vector<1x128xf32>
    %19 = arith.addf %18, %17 : vector<1x128xf32>
    %c0_7 = arith.constant 0 : index
    %c0_8 = arith.constant 0 : index
    %20 = vector.load %arg6[%c0_7, %c0_8] : memref<1x128xf32, #tpu.memory_space<vmem>>, vector<1x128xf32>
    tpu.vector_store %arg6[%c0_7, %c0_8], %19 {strides = array<i32>} : memref<1x128xf32, #tpu.memory_space<vmem>>, vector<1x128xf32>,
    %c0_i32_9 = arith.constant 0 : i32
    %21 = arith.cmpi eq, %arg1, %c0_i32_9 : i32
    %22 = arith.extui %21 : i1 to i32
    %c0_i32_10 = arith.constant 0 : i32
    %23 = arith.cmpi ne, %22, %c0_i32_10 : i32
    scf.if %23 {
      %c0_11 = arith.constant 0 : index
      %c0_12 = arith.constant 0 : index
      %24 = vector.load %arg6[%c0_11, %c0_12] : memref<1x128xf32, #tpu.memory_space<vmem>>, vector<1x128xf32>
      %25 = vector.shape_cast %24 : vector<1x128xf32> to vector<1x1x128xf32>
      %cst_13 = arith.constant dense<0.000000e+00> : vector<1xf32>
      %26 = vector.multi_reduction <add>, %25, %cst_13 [1, 2] : vector<1x1x128xf32> to vector<1xf32>
      %27 = vector.shape_cast %26 : vector<1xf32> to vector<1x1x1xf32>
      %28 = vector.extract %27[0, 0, 0] : f32 from vector<1x1x1xf32>
      %cst_14 = arith.constant 0.000000e+00 : f32
      %29 = vector.broadcast %cst_14 : f32 to vector<1x8x128xf32>
      %30 = vector.broadcast %28 : f32 to vector<1x8x128xf32>
      %31 = arith.addf %29, %30 : vector<1x8x128xf32>
      %c0_15 = arith.constant 0 : index
      %c0_16 = arith.constant 0 : index
      %c0_17 = arith.constant 0 : index
      %32 = vector.load %arg5[%c0_15, %c0_16, %c0_17] : memref<1x8x128xf32, #tpu.memory_space<vmem>>, vector<1x8x128xf32>
      tpu.vector_store %arg5[%c0_15, %c0_16, %c0_17], %31 {strides = array<i32>} : memref<1x8x128xf32, #tpu.memory_space<vmem>>, vector<1x8x128xf32>,
    } else {
    }
    return
  }
  func.func @transform_0(%arg0: i32, %arg1: i32) -> (i32, i32) {
    %c1_i32 = arith.constant 1 : i32
    %0 = arith.muli %arg0, %c1_i32 : i32
    %1 = arith.addi %0, %arg1 : i32
    %c0_i32 = arith.constant 0 : i32
    %c0_i32_0 = arith.constant 0 : i32
    return %1, %c0_i32 : i32, i32
  }
  func.func @transform_1(%arg0: i32, %arg1: i32) -> (i32, i32) {
    %c1_i32 = arith.constant 1 : i32
    %0 = arith.muli %arg0, %c1_i32 : i32
    %1 = arith.addi %0, %arg1 : i32
    %c0_i32 = arith.constant 0 : i32
    %c0_i32_0 = arith.constant 0 : i32
    return %1, %c0_i32 : i32, i32
  }
  func.func @transform_2(%arg0: i32, %arg1: i32) -> (i32, i32) {
    %c1_i32 = arith.constant 1 : i32
    %0 = arith.muli %arg0, %c1_i32 : i32
    %1 = arith.addi %0, %arg1 : i32
    %c0_i32 = arith.constant 0 : i32
    %c0_i32_0 = arith.constant 0 : i32
    return %1, %c0_i32 : i32, i32
  }
  func.func @transform_3(%arg0: i32, %arg1: i32) -> (i32, i32, i32) {
    %c0_i32 = arith.constant 0 : i32
    %c0_i32_0 = arith.constant 0 : i32
    %c0_i32_1 = arith.constant 0 : i32
    return %arg0, %c0_i32, %c0_i32_0 : i32, i32, i32
  }
}

</mosaic_0001>

<llo_original>
// kernel: tpu_custom_call.1
$region0: #{tpu_custom_call.1}
  #allocation0 [shape = 'u32[]', space=smem, size = 0x4, offset = 0x4, fixed_abs, tag = 'smem constant byte address 0x4 - core index']
  #allocation1 [shape = 'u32[144,128]{1,0:T(1,128)}', space=vmem, size = 0x12000, scoped, tag = 'internal scratch']
  #allocation2 [shape = 'f32[1,128]{1,0:T(1,128)}', space=vmem, size = 0x200, scoped, tag = 'scratch operand']
  %s0 = inlined_call_operand.hbm [shape: f32[32,128], index: 0, kind: input, shape index: {}]
  %s1 = inlined_call_operand.hbm [shape: f32[32,128], index: 1, kind: input, shape index: {}]
  %s2 = inlined_call_operand.hbm [shape: f32[32,128], index: 2, kind: input, shape index: {}]
  %s3 = inlined_call_operand.hbm [shape: f32[2,8,128], index: 3, kind: output, shape index: {}]
  %s4 = sld [smem:[#allocation0]]
  $region65: #{tpu_custom_call.1} parent=0
    _
  %s6 = ssub.s32 1, %s4
  %s7 = scalar_select 0, %s6, %s4
  $region1: #{tpu_custom_call.1} parent=0
    #allocation3 [shape = 'u8[16384]{0}', space=vmem, size = 0x4000, scoped, tag = 'input window, operand 0']
    #allocation4 [shape = 's32[2]{0}', space=sflag, size = 0x8, scoped, tag = 'scoped memory for tpu_custom_call.1']
    #allocation5 [shape = 's32[2]{0}', space=sflag, size = 0x8, scoped, tag = 'scoped memory for tpu_custom_call.1']
    #allocation6 [shape = 'u8[16384]{0}', space=vmem, size = 0x4000, scoped, tag = 'input window, operand 1']
    #allocation7 [shape = 's32[2]{0}', space=sflag, size = 0x8, scoped, tag = 'scoped memory for tpu_custom_call.1']
    #allocation8 [shape = 'u8[16384]{0}', space=vmem, size = 0x4000, scoped, tag = 'input window, operand 2']
    #allocation9 [shape = 'u8[8192]{0}', space=vmem, size = 0x2000, scoped, tag = 'output window, operand 0']
    %8 = vsyncpa [#allocation4], 0
    %s9 = scalar_lea.sflag [#allocation4], 1
    %10 = vsyncpa %s9, 0
    %11 = vsyncpa [#allocation7], 0
    %s12 = scalar_lea.sflag [#allocation7], 1
    %13 = vsyncpa %s12, 0
    %14 = vsyncpa [#allocation5], 0
    %s15 = scalar_lea.sflag [#allocation5], 1
    %16 = vsyncpa %s15, 0
    loop: start=0, step=1, limit=4
    $region2: #{tpu_custom_call.1} parent=1 // loop_pre_header
      _
    $region3: #{tpu_custom_call.1} parent=1 // loop_header
      %s18 = sphi 0, %s22
      %p19 = scmp.ge.s32.totalorder %s18, 4
      %s25 = sphi 0, %s37
      %s26 = sphi 0, %s33
      %s27 = sphi 0, %s25
      %s28 = sphi 0, %s26
      %s29 = sphi 0, %s27
      %s30 = sphi 0, %s28
      %s42 = sphi 0, %s44
      %s45 = sphi 0, %s42
      %s46 = sphi 0, %s45
      %s62 = sphi 0, %s46
      %s70 = sphi 0, %s72
      %s73 = sphi 0, %s70
      %s74 = sphi 0, %s73
      %s90 = sphi 0, %s74
      %s98 = sphi 0, %s100
      %s101 = sphi 0, %s98
      %s102 = sphi 0, %s101
      %s118 = sphi 0, %s102
      %s124 = sphi 0, %s126
      %s127 = sphi 0, %s124
      %s128 = sphi 0, %s127
      %s144 = sphi 0, %s128
    $region4: #{tpu_custom_call.1} parent=1 // loop_header_branch
      %21 = sbr.rel (%p19) target = $region8
    $region5: #{tpu_custom_call.1} parent=1 // loop_body
      %s23 = ssub.s32 %s18, 1
      %s24 = ssub.s32 %s18, 2
      %s31 = sadd.s32 1, %s26
      %p32 = scmp.ge.s32.totalorder %s31, 1
      %s33 = scalar_select %p32, 0, %s31
      %s34 = sadd.s32 1, %s25
      %s35 = scalar_select %p32, %s34, %s25
      %p36 = scmp.ge.s32.totalorder %s35, 2
      %s37 = scalar_select %p36, 0, %s35
      %s38 = sadd.s32 %s25, %s26
      %s39 = sadd.s32 %s37, %s33
      %s40 = ssub.s32 %s38, %s39
      %p41 = scmp.eq.s32.totalorder %s40, 0
      %s43 = sadd.s32 %s42, 1
      %s44 = scalar_select %p41, %s42, %s43
      %p47 = pneg %p41
      %p48 = scmp.eq.s32.totalorder %s18, 1
      %p49 = por %p47, %p48
      %p50 = scmp.ne.s32.totalorder %s42, %s45
      %p51 = scmp.eq.s32.totalorder %s18, 0
      %p52 = por %p50, %p51
      %p53 = scmp.ne.s32.totalorder %s42, %s45
      %p54 = scmp.eq.s32.totalorder %s23, 1
      %p55 = por %p53, %p54
      %p56 = scmp.ne.s32.totalorder %s45, %s46
      %p57 = scmp.eq.s32.totalorder %s23, 0
      %p58 = por %p56, %p57
      %p59 = scmp.ne.s32.totalorder %s45, %s46
      %p60 = scmp.eq.s32.totalorder %s24, 1
      %p61 = por %p59, %p60
      %p63 = scmp.ne.s32.totalorder %s46, %s62
      %p64 = scmp.eq.s32.totalorder %s24, 0
      %p65 = por %p63, %p64
      %s66 = sadd.s32 %s25, %s26
      %s67 = sadd.s32 %s37, %s33
      %s68 = ssub.s32 %s66, %s67
      %p69 = scmp.eq.s32.totalorder %s68, 0
      %s71 = sadd.s32 %s70, 1
      %s72 = scalar_select %p69, %s70, %s71
      %p75 = pneg %p69
      %p76 = scmp.eq.s32.totalorder %s18, 1
      %p77 = por %p75, %p76
      %p78 = scmp.ne.s32.totalorder %s70, %s73
      %p79 = scmp.eq.s32.totalorder %s18, 0
      %p80 = por %p78, %p79
      %p81 = scmp.ne.s32.totalorder %s70, %s73
      %p82 = scmp.eq.s32.totalorder %s23, 1
      %p83 = por %p81, %p82
      %p84 = scmp.ne.s32.totalorder %s73, %s74
      %p85 = scmp.eq.s32.totalorder %s23, 0
      %p86 = por %p84, %p85
      %p87 = scmp.ne.s32.totalorder %s73, %s74
      %p88 = scmp.eq.s32.totalorder %s24, 1
      %p89 = por %p87, %p88
      %p91 = scmp.ne.s32.totalorder %s74, %s90
      %p92 = scmp.eq.s32.totalorder %s24, 0
      %p93 = por %p91, %p92
      %s94 = sadd.s32 %s25, %s26
      %s95 = sadd.s32 %s37, %s33
      %s96 = ssub.s32 %s94, %s95
      %p97 = scmp.eq.s32.totalorder %s96, 0
      %s99 = sadd.s32 %s98, 1
      %s100 = scalar_select %p97, %s98, %s99
      %p103 = pneg %p97
      %p104 = scmp.eq.s32.totalorder %s18, 1
      %p105 = por %p103, %p104
      %p106 = scmp.ne.s32.totalorder %s98, %s101
      %p107 = scmp.eq.s32.totalorder %s18, 0
      %p108 = por %p106, %p107
      %p109 = scmp.ne.s32.totalorder %s98, %s101
      %p110 = scmp.eq.s32.totalorder %s23, 1
      %p111 = por %p109, %p110
      %p112 = scmp.ne.s32.totalorder %s101, %s102
      %p113 = scmp.eq.s32.totalorder %s23, 0
      %p114 = por %p112, %p113
      %p115 = scmp.ne.s32.totalorder %s101, %s102
      %p116 = scmp.eq.s32.totalorder %s24, 1
      %p117 = por %p115, %p116
      %p119 = scmp.ne.s32.totalorder %s102, %s118
      %p120 = scmp.eq.s32.totalorder %s24, 0
      %p121 = por %p119, %p120
      %s122 = ssub.s32 %s25, %s37
      %p123 = scmp.eq.s32.totalorder %s122, 0
      %s125 = sadd.s32 %s124, 1
      %s126 = scalar_select %p123, %s124, %s125
      %p129 = pneg %p123
      %p130 = scmp.eq.s32.totalorder %s18, 1
      %p131 = por %p129, %p130
      %p132 = scmp.ne.s32.totalorder %s124, %s127
      %p133 = scmp.eq.s32.totalorder %s18, 0
      %p134 = por %p132, %p133
      %p135 = scmp.ne.s32.totalorder %s124, %s127
      %p136 = scmp.eq.s32.totalorder %s23, 1
      %p137 = por %p135, %p136
      %p138 = scmp.ne.s32.totalorder %s127, %s128
      %p139 = scmp.eq.s32.totalorder %s23, 0
      %p140 = por %p138, %p139
      %p141 = scmp.ne.s32.totalorder %s127, %s128
      %p142 = scmp.eq.s32.totalorder %s24, 1
      %p143 = por %p141, %p142
      %p145 = scmp.ne.s32.totalorder %s128, %s144
      %p146 = scmp.eq.s32.totalorder %s24, 0
      %p147 = por %p145, %p146
      %p148 = scmp.le.s32.totalorder 1, %s18
      %p149 = scmp.lt.s32.totalorder %s18, 3
      %p150 = pnand %p148, %p149
      %p151 = pneg %p150
      // Predicated region
      $region9: #{tpu_custom_call.1} parent=5 // pred_check
        _
      $region10: #{tpu_custom_call.1} parent=5 // pred_check_branch
        %153 = sbr.rel (%p150) target = $region12
      $region11: #{tpu_custom_call.1} parent=5 // pred_region
        %s154 = ssub.s32 %s18, 1
      $region12: #{tpu_custom_call.1} parent=5 // pred_fallthru
        _
      %p155 = scmp.lt.s32.totalorder %s18, 2
      // Predicated region
      $region13: #{tpu_custom_call.1} parent=5 // pred_check
        %p156 = pneg %p155
      $region14: #{tpu_custom_call.1} parent=5 // pred_check_branch
        %158 = sbr.rel (%p156) target = $region16
      $region15: #{tpu_custom_call.1} parent=5 // pred_region
        // Predicated region
        $region17: #{tpu_custom_call.1} parent=15 // pred_check
          %p159 = pneg %p52
        $region18: #{tpu_custom_call.1} parent=15 // pred_check_branch
          %161 = sbr.rel (%p159) target = $region20
        $region19: #{tpu_custom_call.1} parent=15 // pred_region
          %s162 = sand.u32 %s42, 1
          %s163 = scalar_lea.sflag [#allocation4], %s162
          %s164 = sand.u32 %s42, 1
          %s165 = smul.addr %s164, 16
          %s166 = scalar_lea.vmem [#allocation3], %s165
          %s167 = sadd.s32 %s25, %s26
          %s168 = smul.u32 2, %s167
          %s170 = ssub.s32 256, 256
          %171 = vsyncadd %s163, %s170
          %s172 = smul.addr %s168, 128
          %s173 = scalar_lea.hbm %s0, %s172
          %s174 = sshll.u32 %s166, 4
          %s175 = int_to_ptr.vmem [resolvable:$true] %s174
          %180 = dma.hbm_to_vmem [thread:$0]  %s173, 256, %s175, %s163, 128, 128, 8
        $region20: #{tpu_custom_call.1} parent=15 // pred_fallthru
          _
        // Predicated region
        $region21: #{tpu_custom_call.1} parent=15 // pred_check
          %p181 = pneg %p80
        $region22: #{tpu_custom_call.1} parent=15 // pred_check_branch
          %183 = sbr.rel (%p181) target = $region24
        $region23: #{tpu_custom_call.1} parent=15 // pred_region
          %s184 = sand.u32 %s18, 1
          %s185 = scalar_lea.sflag [#allocation7], %s184
          %s186 = sand.u32 %s70, 1
          %s187 = smul.addr %s186, 16
          %s188 = scalar_lea.vmem [#allocation6], %s187
          %s189 = sadd.s32 %s25, %s26
          %s190 = smul.u32 2, %s189
          %s192 = ssub.s32 256, 256
          %193 = vsyncadd %s185, %s192
          %s194 = smul.addr %s190, 128
          %s195 = scalar_lea.hbm %s1, %s194
          %s196 = sshll.u32 %s188, 4
          %s197 = int_to_ptr.vmem [resolvable:$true] %s196
          %202 = dma.hbm_to_vmem [thread:$0]  %s195, 256, %s197, %s185, 128, 128, 8
        $region24: #{tpu_custom_call.1} parent=15 // pred_fallthru
          _
        // Predicated region
        $region25: #{tpu_custom_call.1} parent=15 // pred_check
          %p203 = pneg %p108
        $region26: #{tpu_custom_call.1} parent=15 // pred_check_branch
          %205 = sbr.rel (%p203) target = $region28
        $region27: #{tpu_custom_call.1} parent=15 // pred_region
          %s206 = sand.u32 %s18, 1
          %s207 = scalar_lea.sflag [#allocation7], %s206
          %s208 = sand.u32 %s98, 1
          %s209 = smul.addr %s208, 16
          %s210 = scalar_lea.vmem [#allocation8], %s209
          %s211 = sadd.s32 %s25, %s26
          %s212 = smul.u32 2, %s211
          %s214 = ssub.s32 256, 256
          %215 = vsyncadd %s207, %s214
          %s216 = smul.addr %s212, 128
          %s217 = scalar_lea.hbm %s2, %s216
          %s218 = sshll.u32 %s210, 4
          %s219 = int_to_ptr.vmem [resolvable:$true] %s218
          %224 = dma.hbm_to_vmem [thread:$0]  %s217, 256, %s219, %s207, 128, 128, 8
        $region28: #{tpu_custom_call.1} parent=15 // pred_fallthru
          _
      $region16: #{tpu_custom_call.1} parent=5 // pred_fallthru
        _
      %p225 = scmp.le.s32.totalorder 1, %s18
      %p226 = scmp.lt.s32.totalorder %s18, 3
      %p227 = pnand %p225, %p226
      %p228 = pneg %p227
      // Predicated region
      $region29: #{tpu_custom_call.1} parent=5 // pred_check
        _
      $region30: #{tpu_custom_call.1} parent=5 // pred_check_branch
        %230 = sbr.rel (%p227) target = $region32
      $region31: #{tpu_custom_call.1} parent=5 // pred_region
        %s231 = ssub.s32 %s18, 1
        %s232 = sand.u32 %s45, 1
        %s233 = scalar_lea.sflag [#allocation4], %s232
        %s234 = sand.u32 %s45, 1
        %s235 = smul.addr %s234, 16
        %s236 = scalar_lea.vmem [#allocation3], %s235
        // Predicated region
        $region33: #{tpu_custom_call.1} parent=31 // pred_check
          %p237 = pneg %p58
        $region34: #{tpu_custom_call.1} parent=31 // pred_check_branch
          %239 = sbr.rel (%p237) target = $region36
        $region35: #{tpu_custom_call.1} parent=31 // pred_region
          %240 = dma.done %s233, 256
        $region36: #{tpu_custom_call.1} parent=31 // pred_fallthru
          _
        %s241 = sand.u32 %s23, 1
        %s242 = scalar_lea.sflag [#allocation7], %s241
        %s243 = sand.u32 %s73, 1
        %s244 = smul.addr %s243, 16
        %s245 = scalar_lea.vmem [#allocation6], %s244
        // Predicated region
        $region37: #{tpu_custom_call.1} parent=31 // pred_check
          %p246 = pneg %p86
        $region38: #{tpu_custom_call.1} parent=31 // pred_check_branch
          %248 = sbr.rel (%p246) target = $region40
        $region39: #{tpu_custom_call.1} parent=31 // pred_region
          %249 = dma.done %s242, 256
        $region40: #{tpu_custom_call.1} parent=31 // pred_fallthru
          _
        %s250 = sand.u32 %s23, 1
        %s251 = scalar_lea.sflag [#allocation7], %s250
        %s252 = sand.u32 %s101, 1
        %s253 = smul.addr %s252, 16
        %s254 = scalar_lea.vmem [#allocation8], %s253
        // Predicated region
        $region41: #{tpu_custom_call.1} parent=31 // pred_check
          %p255 = pneg %p114
        $region42: #{tpu_custom_call.1} parent=31 // pred_check_branch
          %257 = sbr.rel (%p255) target = $region44
        $region43: #{tpu_custom_call.1} parent=31 // pred_region
          %258 = dma.done %s251, 256
        $region44: #{tpu_custom_call.1} parent=31 // pred_fallthru
          _
        %s259 = sand.u32 %s45, 1
        %s260 = scalar_lea.sflag [#allocation4], %s259
        %s261 = sand.u32 %s45, 1
        %s262 = smul.addr %s261, 16
        %s263 = scalar_lea.vmem [#allocation3], %s262
        %p264 = pneg %p58
        %p265 = pneg %p55
        %s266 = sand.u32 %s23, 1
        %s267 = scalar_lea.sflag [#allocation7], %s266
        %s268 = sand.u32 %s73, 1
        %s269 = smul.addr %s268, 16
        %s270 = scalar_lea.vmem [#allocation6], %s269
        %p271 = pneg %p86
        %p272 = pneg %p83
        %s273 = sand.u32 %s23, 1
        %s274 = scalar_lea.sflag [#allocation7], %s273
        %s275 = sand.u32 %s101, 1
        %s276 = smul.addr %s275, 16
        %s277 = scalar_lea.vmem [#allocation8], %s276
        %p278 = pneg %p114
        %p279 = pneg %p111
        %p280 = pneg %p140
        %p281 = pneg %p137
        %s282 = sand.u32 %s127, 1
        %s283 = scalar_lea.sflag [#allocation5], %s282
        %s284 = sand.u32 %s127, 1
        %s285 = smul.addr %s284, 8
        %s286 = scalar_lea.vmem [#allocation9], %s285
        %s287 = sadd.s32 %s27, %s28
        %s288 = smul.u32 2, %s287
        %s289 = sadd.s32 %s27, %s28
        %s290 = smul.u32 2, %s289
        %s291 = sadd.s32 %s27, %s28
        %s292 = smul.u32 2, %s291
        %p293 = scmp.eq.s32.totalorder %s28, 0
        // Predicated region
        $region45: #{tpu_custom_call.1} parent=31 // pred_check
          %p294 = pneg %p293
        $region46: #{tpu_custom_call.1} parent=31 // pred_check_branch
          %296 = sbr.rel (%p294) target = $region48
        $region47: #{tpu_custom_call.1} parent=31 // pred_region
          %297 = vst [vmem:[#allocation2] sm:$0x1] 0.0
        $region48: #{tpu_custom_call.1} parent=31 // pred_fallthru
          _
        %v298 = vld [vmem:[%s236] sm:$0xff]
        %v299 = vld [vmem:[%s236 + $0x8] sm:$0xff]
        %v300 = vld [vmem:[%s245] sm:$0xff]
        %v301 = vld [vmem:[%s245 + $0x8] sm:$0xff]
        %v302 = vld [vmem:[%s254] sm:$0xff]
        %v303 = vld [vmem:[%s254 + $0x8] sm:$0xff]
        %v304 = vsub.f32 %v298, %v300
        %v305 = vsub.f32 %v299, %v301
        %v306 = vand.u32 2147483647, %v304
        %v307 = vand.u32 2147483647, %v305
        %v308 = vmul.f32 %v306, %v302
        %v309 = vmul.f32 %v307, %v303
        %v310 = vadd.f32 %v308, %v309
        %v311 = vrot.slane %v310, 4
        %v312 = vadd.f32 %v310, %v311
        %v313 = vrot.slane %v312, 2
        %v314 = vadd.f32 %v312, %v313
        %v315 = vrot.slane %v314, 1
        %v316 = vadd.f32 %v314, %v315
        %v317 = vadd.f32 %v316, 0.0
        %v318 = vld [vmem:[#allocation2] sm:$0x1]
        %v319 = vadd.f32 %v318, %v317
        %320 = vst [vmem:[#allocation2] sm:$0x1] %v319
        // Predicated region
        $region49: #{tpu_custom_call.1} parent=31 // pred_check
          %p321 = pneg %p293
        $region50: #{tpu_custom_call.1} parent=31 // pred_check_branch
          %323 = sbr.rel (%p321) target = $region52
        $region51: #{tpu_custom_call.1} parent=31 // pred_region
          %v324 = vld [vmem:[#allocation2] sm:$0x1]
          %vm325 = vcmask 1040384
          %v326 = vsel %vm325, %v324, 0.0
          %327 = vadd.xlane.f32.xlu0 %v326
          %v328 = vpop.xlane.xlu0 %327
          %v329 = vrot.slane %v328, 4
          %v330 = vadd.f32 %v328, %v329
          %v331 = vrot.slane %v330, 2
          %v332 = vadd.f32 %v330, %v331
          %v333 = vrot.slane %v332, 1
          %v334 = vadd.f32 %v332, %v333
          %s335 = vtos %v334
          %v336 = vstv %s335
          %v337 = vadd.f32 %v336, 0.0
          %338 = vst [vmem:[%s286] sm:$0xff] %v337
        $region52: #{tpu_custom_call.1} parent=31 // pred_fallthru
          _
        %s339 = sand.u32 %s127, 1
        %s340 = scalar_lea.sflag [#allocation5], %s339
        %s341 = sand.u32 %s127, 1
        %s342 = smul.addr %s341, 8
        %s343 = scalar_lea.vmem [#allocation9], %s342
        // Predicated region
        $region53: #{tpu_custom_call.1} parent=31 // pred_check
          %p344 = pneg %p137
        $region54: #{tpu_custom_call.1} parent=31 // pred_check_branch
          %346 = sbr.rel (%p344) target = $region56
        $region55: #{tpu_custom_call.1} parent=31 // pred_region
          %s348 = ssub.s32 128, 128
          %349 = vsyncadd %s340, %s348
          %s350 = smul.addr %s27, 128
          %s351 = scalar_lea.hbm %s3, %s350
          %s353 = sshll.u32 %s343, 4
          %s354 = int_to_ptr.vmem [resolvable:$true] %s353
          %356 = dma.vmem_to_hbm [thread:$0]  %s354, 128, %s351, %s340
        $region56: #{tpu_custom_call.1} parent=31 // pred_fallthru
          _
      $region32: #{tpu_custom_call.1} parent=5 // pred_fallthru
        _
      %p357 = scmp.le.s32.totalorder 2, %s18
      // Predicated region
      $region57: #{tpu_custom_call.1} parent=5 // pred_check
        %p358 = pneg %p357
      $region58: #{tpu_custom_call.1} parent=5 // pred_check_branch
        %360 = sbr.rel (%p358) target = $region60
      $region59: #{tpu_custom_call.1} parent=5 // pred_region
        %s361 = ssub.s32 %s18, 2
        // Predicated region
        $region61: #{tpu_custom_call.1} parent=59 // pred_check
          %p362 = pneg %p143
        $region62: #{tpu_custom_call.1} parent=59 // pred_check_branch
          %364 = sbr.rel (%p362) target = $region64
        $region63: #{tpu_custom_call.1} parent=59 // pred_region
          %s365 = sand.u32 %s128, 1
          %s366 = scalar_lea.sflag [#allocation5], %s365
          %s367 = sand.u32 %s128, 1
          %s368 = smul.addr %s367, 8
          %s369 = scalar_lea.vmem [#allocation9], %s368
          %370 = dma.done %s366, 128
        $region64: #{tpu_custom_call.1} parent=59 // pred_fallthru
          _
      $region60: #{tpu_custom_call.1} parent=5 // pred_fallthru
        _
    $region6: #{tpu_custom_call.1} parent=1 // loop_footer
      %s22 = sadd.s32 1, %s18
    $region7: #{tpu_custom_call.1} parent=1 // loop_footer_branch
      %17 = sbr.rel target = $region3
    $region8: #{tpu_custom_call.1} parent=1 // loop_exit
      _
    %371 = vsyncpa [#allocation4], 1
    %s372 = scalar_lea.sflag [#allocation4], 1
    %373 = vsyncpa %s372, 1
    %374 = vsyncpa [#allocation7], 1
    %s375 = scalar_lea.sflag [#allocation7], 1
    %376 = vsyncpa %s375, 1
    %377 = vsyncpa [#allocation5], 1
    %s378 = scalar_lea.sflag [#allocation5], 1
    %379 = vsyncpa %s378, 1

</llo_original>
